<compile_context>
chip_gen: v6e
topology: v6e:2x2x1
jax: 0.10.0
libtpu: 0.0.40
codegen_flags: <defaults>
</compile_context>

<pallas_src>
import functools
from typing import NamedTuple

import jax
import jax.numpy as jnp
from jax import lax
from jax.experimental import pallas as pl
from jax.experimental.pallas import tpu as pltpu


def _round_up(v, m):
    return (v + m - 1) // m * m


def _vmem_capacity_bytes():
    """Physical VMEM per TensorCore, with a conservative fallback."""
    try:
        info = pltpu.get_tpu_info()
        cap = getattr(info, "vmem_capacity_bytes", None)
        if cap:
            return int(cap)
    except Exception:
        pass
    return 64 << 20  # v7x per-TC size: a safe lower bound across generations


class FFNParams(NamedTuple):
    """Pre-padded / pre-cast FFN parameters (build once, reuse per call)."""
    w1p: jax.Array     # (in_pad, hid_pad)   matmul dtype
    b1p: jax.Array     # (1, hid_pad)        f32
    w2p: jax.Array     # (hid_pad, out_pad)  matmul dtype
    b2p: jax.Array     # (1, out_pad)        f32
    gammap: jax.Array  # (1, out_pad)        f32
    betap: jax.Array   # (1, out_pad)        f32
    in_dim: int
    hidden_dim: int
    out_dim: int


def prepare_ffn_params(w1, b1, w2, b2, gamma, beta, matmul_dtype=jnp.bfloat16):
    """One-time lane-dense pad (multiples of 128) + cast of the FFN params.

    w1: (in_dim, hidden_dim), w2: (hidden_dim, out_dim) -- pre-transposed
    relative to PyTorch's (out, in) Linear storage.
    """
    in_dim, hidden_dim = w1.shape
    out_dim = w2.shape[1]
    in_pad = _round_up(in_dim, 128)
    hid_pad = _round_up(hidden_dim, 128)
    out_pad = _round_up(out_dim, 128)

    w1p = jnp.zeros((in_pad, hid_pad), matmul_dtype).at[:in_dim, :hidden_dim].set(
        w1.astype(matmul_dtype))
    w2p = jnp.zeros((hid_pad, out_pad), matmul_dtype).at[:hidden_dim, :out_dim].set(
        w2.astype(matmul_dtype))
    b1p = jnp.zeros((1, hid_pad), jnp.float32).at[0, :hidden_dim].set(
        b1.astype(jnp.float32))
    b2p = jnp.zeros((1, out_pad), jnp.float32).at[0, :out_dim].set(
        b2.astype(jnp.float32))
    gp = jnp.zeros((1, out_pad), jnp.float32).at[0, :out_dim].set(
        gamma.astype(jnp.float32))
    bp = jnp.zeros((1, out_pad), jnp.float32).at[0, :out_dim].set(
        beta.astype(jnp.float32))
    return FFNParams(w1p, b1p, w2p, b2p, gp, bp, in_dim, hidden_dim, out_dim)


def _ffn_kernel(x_ref, w1_ref, b1_ref, w2_ref, b2_ref, gamma_ref, beta_ref,
                o_ref, acc_ref, *, eps, out_dim, approx_gelu):
    k = pl.program_id(1)

    @pl.when(k == 0)
    def _():
        acc_ref[...] = jnp.zeros_like(acc_ref)

    # ---- Linear 1 (one chunk of hidden cols): bf16 operands, f32 MXU accum.
    h = jnp.dot(x_ref[...], w1_ref[...], preferred_element_type=jnp.float32)
    h = h + b1_ref[...]

    # ---- GELU in f32 (padded hidden cols give GELU(0)=0 -> contribute 0).
    if approx_gelu:
        # tanh approximation -> EUP slot; differs from erf GELU at ~1e-3.
        c = jnp.float32(0.7978845608028654)  # sqrt(2/pi)
        h = 0.5 * h * (1.0 + jnp.tanh(c * (h + jnp.float32(0.044715) * h * h * h)))
    else:
        h = 0.5 * h * (1.0 + lax.erf(h * jnp.float32(0.7071067811865476)))

    # Dropout(p=0.0) is a no-op in eval / at p=0.
    # TODO(synk): training-mode dropout (pltpu.prng_*) not implemented.

    # ---- Linear 2 chunk, accumulated into the f32 VMEM scratch.
    acc_ref[...] += jnp.dot(h.astype(w2_ref.dtype), w2_ref[...],
                            preferred_element_type=jnp.float32)

    # ---- Epilogue on the last hidden chunk: bias2 + LayerNorm over the TRUE
    #      out_dim (padded cols are zero and must not bias the statistics).
    @pl.when(k == pl.num_programs(1) - 1)
    def _():
        y = acc_ref[...] + b2_ref[...]
        out_pad = o_ref.shape[-1]
        inv_d = jnp.float32(1.0 / out_dim)
        if out_pad == out_dim:
            mean = jnp.sum(y, axis=-1, keepdims=True) * inv_d
            centered = y - mean
        else:
            valid = (lax.broadcasted_iota(jnp.int32, (1, out_pad), 1) < out_dim
                     ).astype(jnp.float32)
            mean = jnp.sum(y * valid, axis=-1, keepdims=True) * inv_d
            centered = (y - mean) * valid
        var = jnp.sum(centered * centered, axis=-1, keepdims=True) * inv_d
        y_norm = centered * lax.rsqrt(var + jnp.float32(eps))
        # gamma/beta are zero in padded cols -> padded outputs are 0 (sliced off).
        o_ref[...] = (y_norm * gamma_ref[...] + beta_ref[...]).astype(o_ref.dtype)


def feed_forward(x, params: FFNParams, *, tile_m=256, tile_k=512, eps=1e-5,
                 dropout=0.0, approx_gelu=False):
    """Fused FFN.  x: (N, in_dim) -> (N, out_dim) in x.dtype."""
    if dropout != 0.0:
        # TODO(synk): training-mode dropout not implemented; p=0 matches eval.
        raise NotImplementedError("dropout > 0 not supported in this kernel")

    n, in_dim = x.shape
    assert in_dim == params.in_dim, "x feature dim does not match params"
    out_dim = params.out_dim
    in_pad, hid_pad = params.w1p.shape
    out_pad = params.w2p.shape[1]
    matmul_dtype = params.w1p.dtype
    out_dtype = x.dtype

    # ---- Row (M) tiling: big tiles for MXU utilization; shrink for tiny N;
    #      guarantee >= 2 parallel grid steps when N > 128 (v7x: 2 TCs).
    tile_m_eff = _round_up(min(tile_m, _round_up(n, 8)), 8)
    if n > 128 and _round_up(n, tile_m_eff) // tile_m_eff < 2:
        tile_m_eff = max(128, _round_up(_round_up(n, 8) // 2, 8))
    n_pad = _round_up(n, tile_m_eff)
    m_tiles = n_pad // tile_m_eff

    # ---- Hidden (K) tiling: largest multiple of 128 that divides hid_pad
    #      and is <= tile_k.
    units = hid_pad // 128
    max_units = max(1, tile_k // 128)
    tk_units = 1
    for cand in range(min(max_units, units), 0, -1):
        if units % cand == 0:
            tk_units = cand
            break
    tile_k_eff = tk_units * 128
    k_tiles = hid_pad // tile_k_eff

    # ---- Pad/cast x only when necessary (aligned fast path).
    if n_pad == n and in_pad == in_dim:
        xp = x if x.dtype == matmul_dtype else x.astype(matmul_dtype)
    else:
        xp = jnp.zeros((n_pad, in_pad), matmul_dtype).at[:n, :in_dim].set(
            x.astype(matmul_dtype))

    # ---- VMEM budget, clamped to the actual chip capacity.
    itm = jnp.dtype(matmul_dtype).itemsize
    ito = jnp.dtype(out_dtype).itemsize
    nbuf_w = 1 if k_tiles == 1 else 2          # weight-chunk buffering depth
    vmem_need = (
        2 * tile_m_eff * in_pad * itm                                   # x tiles
        + nbuf_w * (in_pad * tile_k_eff + tile_k_eff * out_pad) * itm   # W1/W2 chunks
        + nbuf_w * tile_k_eff * 4 + 3 * out_pad * 4                     # b1 chunk, b2/g/b
        + 2 * tile_m_eff * out_pad * ito                                # output tiles
        + tile_m_eff * (out_pad + tile_k_eff) * 4                       # acc + h
    )
    vmem_limit = int(1.3 * vmem_need) + (4 << 20)
    vmem_limit = max(32 << 20, min(vmem_limit, int(0.85 * _vmem_capacity_bytes())))

    cost = pl.CostEstimate(
        flops=2 * n_pad * hid_pad * (in_pad + out_pad),
        transcendentals=n_pad * hid_pad,
        bytes_accessed=(n_pad * in_pad * itm
                        + (m_tiles if k_tiles > 1 else 1)
                        * (in_pad * hid_pad + hid_pad * out_pad) * itm
                        + n_pad * out_pad * ito),
    )

    def spec(shape, index_map, bufs=None):
        if bufs is None:
            return pl.BlockSpec(shape, index_map)
        return pl.BlockSpec(shape, index_map, pipeline_mode=pl.Buffered(bufs))

    # Constant-index weight blocks (single K chunk) need only one buffer;
    # streamed chunks keep the default double-buffering to hide DMA.
    w_bufs = 1 if k_tiles == 1 else None

    kernel = functools.partial(_ffn_kernel, eps=eps, out_dim=out_dim,
                               approx_gelu=approx_gelu)

    out_padded = pl.pallas_call(
        kernel,
        out_shape=jax.ShapeDtypeStruct((n_pad, out_pad), out_dtype),
        grid_spec=pltpu.PrefetchScalarGridSpec(
            num_scalar_prefetch=0,
            grid=(m_tiles, k_tiles),
            in_specs=[
                spec((tile_m_eff, in_pad), lambda i, k: (i, 0)),           # x
                spec((in_pad, tile_k_eff), lambda i, k: (0, k), w_bufs),   # W1 chunk
                spec((1, tile_k_eff), lambda i, k: (0, k), w_bufs),        # b1 chunk
                spec((tile_k_eff, out_pad), lambda i, k: (k, 0), w_bufs),  # W2 chunk
                spec((1, out_pad), lambda i, k: (0, 0), 1),                # b2
                spec((1, out_pad), lambda i, k: (0, 0), 1),                # gamma
                spec((1, out_pad), lambda i, k: (0, 0), 1),                # beta
            ],
            out_specs=pl.BlockSpec((tile_m_eff, out_pad), lambda i, k: (i, 0)),
            scratch_shapes=[pltpu.VMEM((tile_m_eff, out_pad), jnp.float32)],
        ),
        compiler_params=pltpu.CompilerParams(
            dimension_semantics=("parallel", "arbitrary"),
            vmem_limit_bytes=vmem_limit,
        ),
        cost_estimate=cost,
    )(xp, params.w1p, params.b1p, params.w2p, params.b2p,
      params.gammap, params.betap)

    if n_pad == n and out_pad == out_dim:
        return out_padded
    return out_padded[:n, :out_dim]


def _reference(x, w1, b1, w2, b2, gamma, beta, eps=1e-5,
               matmul_dtype=jnp.float32):
    md = matmul_dtype
    h = jnp.dot(x.astype(md), w1.astype(md),
                preferred_element_type=jnp.float32) + b1
    h = 0.5 * h * (1.0 + lax.erf(h / jnp.sqrt(2.0)))
    y = jnp.dot(h.astype(md), w2.astype(md),
                preferred_element_type=jnp.float32) + b2
    mean = jnp.mean(y, axis=-1, keepdims=True)
    var = jnp.mean((y - mean) ** 2, axis=-1, keepdims=True)
    return (y - mean) / jnp.sqrt(var + eps) * gamma + beta


def _make_inputs(key, n, in_dim, hidden_dim, out_dim):
    kx, kw1, kb1, kw2, kb2 = jax.random.split(key, 5)
    x = jax.random.normal(kx, (n, in_dim), dtype=jnp.float32)
    # Parameter init mimicking PyTorch Linear's uniform(+-1/sqrt(fan_in)).
    lim1 = 1.0 / (in_dim ** 0.5)
    w1 = jax.random.uniform(kw1, (in_dim, hidden_dim), jnp.float32, -lim1, lim1)
    b1 = jax.random.uniform(kb1, (hidden_dim,), jnp.float32, -lim1, lim1)
    lim2 = 1.0 / (hidden_dim ** 0.5)
    w2 = jax.random.uniform(kw2, (hidden_dim, out_dim), jnp.float32, -lim2, lim2)
    b2 = jax.random.uniform(kb2, (out_dim,), jnp.float32, -lim2, lim2)
    gamma = jnp.ones((out_dim,), jnp.float32)   # LayerNorm default init
    beta = jnp.zeros((out_dim,), jnp.float32)
    return x, w1, b1, w2, b2, gamma, beta


if __name__ == "__main__":
    key = jax.random.PRNGKey(0)
    k1, k2 = jax.random.split(key)

    # ---- Case 1: small shapes consistent with FeedForward(in, hidden, out).
    x, w1, b1, w2, b2, gamma, beta = _make_inputs(k1, 16, 32, 64, 32)
    params = prepare_ffn_params(w1, b1, w2, b2, gamma, beta)  # one-time pad/cast
    out = jax.block_until_ready(feed_forward(x, params))
    assert out.shape == (16, 32)
    # Tight check vs. a reference mirroring the bf16-operand / f32-accum matmuls.
    ref_bf16 = _reference(x, w1, b1, w2, b2, gamma, beta,
                          matmul_dtype=jnp.bfloat16)
    assert jnp.allclose(out, ref_bf16, atol=5e-3, rtol=5e-3)
    # Loose check vs. exact f32 PyTorch-semantics reference.
    ref_f32 = _reference(x, w1, b1, w2, b2, gamma, beta)
    assert jnp.allclose(out, ref_f32, atol=1e-1, rtol=1e-1)

    # ---- Case 2: exercises the hidden-dim (K) accumulation path and the
    #      >=2-step parallel M grid, still at small shapes.
    x, w1, b1, w2, b2, gamma, beta = _make_inputs(k2, 160, 128, 384, 128)
    params = prepare_ffn_params(w1, b1, w2, b2, gamma, beta)
    out = jax.block_until_ready(feed_forward(x, params, tile_k=128))
    assert out.shape == (160, 128)
    ref_bf16 = _reference(x, w1, b1, w2, b2, gamma, beta,
                          matmul_dtype=jnp.bfloat16)
    assert jnp.allclose(out, ref_bf16, atol=5e-3, rtol=5e-3)

    print("KERNEL_OK")
</pallas_src>

<mosaic_0001>
module attributes {stable_mosaic.version = 11 : i64} {
  func.func @_ffn_kernel(%arg0: i32, %arg1: i32, %arg2: memref<16x128xbf16, #tpu.memory_space<vmem>>, %arg3: memref<128x128xbf16, #tpu.memory_space<vmem>>, %arg4: memref<1x128xf32, #tpu.memory_space<vmem>>, %arg5: memref<128x128xbf16, #tpu.memory_space<vmem>>, %arg6: memref<1x128xf32, #tpu.memory_space<vmem>>, %arg7: memref<1x128xf32, #tpu.memory_space<vmem>>, %arg8: memref<1x128xf32, #tpu.memory_space<vmem>>, %arg9: memref<16x128xf32, #tpu.memory_space<vmem>>, %arg10: memref<16x128xf32, #tpu.memory_space<vmem>>) attributes {dimension_semantics = [#tpu.dimension_semantics<parallel>, #tpu.dimension_semantics<arbitrary>], iteration_bounds = array<i64: 1, 1>, scalar_prefetch = 0 : i64, scratch_operands = 1 : i64, tpu.core_type = #tpu.core_type<tc>, window_params = [{transform_indices = @transform_0, window_bounds = array<i64: 16, 128>}, {pipeline_mode = #tpu.pipeline_mode<synchronous>, transform_indices = @transform_1, window_bounds = array<i64: 128, 128>}, {pipeline_mode = #tpu.pipeline_mode<synchronous>, transform_indices = @transform_2, window_bounds = array<i64: 1, 128>}, {pipeline_mode = #tpu.pipeline_mode<synchronous>, transform_indices = @transform_3, window_bounds = array<i64: 128, 128>}, {pipeline_mode = #tpu.pipeline_mode<synchronous>, transform_indices = @transform_4, window_bounds = array<i64: 1, 128>}, {pipeline_mode = #tpu.pipeline_mode<synchronous>, transform_indices = @transform_5, window_bounds = array<i64: 1, 128>}, {pipeline_mode = #tpu.pipeline_mode<synchronous>, transform_indices = @transform_6, window_bounds = array<i64: 1, 128>}, {transform_indices = @transform_7, window_bounds = array<i64: 16, 128>}]} {
    %c0_i32 = arith.constant 0 : i32
    %0 = arith.cmpi eq, %arg1, %c0_i32 : i32
    %1 = arith.extui %0 : i1 to i32
    %c0_i32_0 = arith.constant 0 : i32
    %2 = arith.cmpi ne, %1, %c0_i32_0 : i32
    scf.if %2 {
      %cst_18 = arith.constant 0.000000e+00 : f32
      %26 = vector.broadcast %cst_18 : f32 to vector<16x128xf32>
      %c0_19 = arith.constant 0 : index
      %c0_20 = arith.constant 0 : index
      %27 = vector.load %arg10[%c0_19, %c0_20] : memref<16x128xf32, #tpu.memory_space<vmem>>, vector<16x128xf32>
      tpu.vector_store %arg10[%c0_19, %c0_20], %26 {strides = array<i32>} : memref<16x128xf32, #tpu.memory_space<vmem>>, vector<16x128xf32>,
    } else {
    }
    %c0 = arith.constant 0 : index
    %c0_1 = arith.constant 0 : index
    %3 = vector.load %arg2[%c0, %c0_1] : memref<16x128xbf16, #tpu.memory_space<vmem>>, vector<16x128xbf16>
    %c0_2 = arith.constant 0 : index
    %c0_3 = arith.constant 0 : index
    %4 = vector.load %arg3[%c0_2, %c0_3] : memref<128x128xbf16, #tpu.memory_space<vmem>>, vector<128x128xbf16>
    %cst = arith.constant dense<0.000000e+00> : vector<16x128xf32>
    %5 = tpu.matmul %3, %4, %cst {dimension_numbers = #tpu.dot_dimension_numbers<[1], [0], [0], [1], [0, 0, 1, 1], [], []>} : vector<16x128xbf16>, vector<128x128xbf16>, vector<16x128xf32> -> vector<16x128xf32>
    %c0_4 = arith.constant 0 : index
    %c0_5 = arith.constant 0 : index
    %6 = vector.load %arg4[%c0_4, %c0_5] : memref<1x128xf32, #tpu.memory_space<vmem>>, vector<1x128xf32>
    %7 = vector.broadcast %6 : vector<1x128xf32> to vector<16x128xf32>
    %8 = arith.addf %5, %7 : vector<16x128xf32>
    %cst_6 = arith.constant 5.000000e-01 : f32
    %9 = vector.broadcast %cst_6 : f32 to vector<16x128xf32>
    %10 = arith.mulf %9, %8 : vector<16x128xf32>
    %cst_7 = arith.constant 0.707106769 : f32
    %11 = vector.broadcast %cst_7 : f32 to vector<16x128xf32>
    %12 = arith.mulf %8, %11 : vector<16x128xf32>
    %13 = math.erf %12 : vector<16x128xf32>
    %cst_8 = arith.constant 1.000000e+00 : f32
    %14 = vector.broadcast %cst_8 : f32 to vector<16x128xf32>
    %15 = arith.addf %14, %13 : vector<16x128xf32>
    %16 = arith.mulf %10, %15 : vector<16x128xf32>
    %c0_9 = arith.constant 0 : index
    %c0_10 = arith.constant 0 : index
    %17 = vector.load %arg10[%c0_9, %c0_10] : memref<16x128xf32, #tpu.memory_space<vmem>>, vector<16x128xf32>
    %18 = arith.truncf %16 : vector<16x128xf32> to vector<16x128xbf16>
    %c0_11 = arith.constant 0 : index
    %c0_12 = arith.constant 0 : index
    %19 = vector.load %arg5[%c0_11, %c0_12] : memref<128x128xbf16, #tpu.memory_space<vmem>>, vector<128x128xbf16>
    %cst_13 = arith.constant dense<0.000000e+00> : vector<16x128xf32>
    %20 = tpu.matmul %18, %19, %cst_13 {dimension_numbers = #tpu.dot_dimension_numbers<[1], [0], [0], [1], [0, 0, 1, 1], [], []>} : vector<16x128xbf16>, vector<128x128xbf16>, vector<16x128xf32> -> vector<16x128xf32>
    %21 = arith.addf %17, %20 : vector<16x128xf32>
    %c0_14 = arith.constant 0 : index
    %c0_15 = arith.constant 0 : index
    %22 = vector.load %arg10[%c0_14, %c0_15] : memref<16x128xf32, #tpu.memory_space<vmem>>, vector<16x128xf32>
    tpu.vector_store %arg10[%c0_14, %c0_15], %21 {strides = array<i32>} : memref<16x128xf32, #tpu.memory_space<vmem>>, vector<16x128xf32>,
    %c0_i32_16 = arith.constant 0 : i32
    %23 = arith.cmpi eq, %arg1, %c0_i32_16 : i32
    %24 = arith.extui %23 : i1 to i32
    %c0_i32_17 = arith.constant 0 : i32
    %25 = arith.cmpi ne, %24, %c0_i32_17 : i32
    scf.if %25 {
      %c0_18 = arith.constant 0 : index
      %c0_19 = arith.constant 0 : index
      %26 = vector.load %arg10[%c0_18, %c0_19] : memref<16x128xf32, #tpu.memory_space<vmem>>, vector<16x128xf32>
      %c0_20 = arith.constant 0 : index
      %c0_21 = arith.constant 0 : index
      %27 = vector.load %arg6[%c0_20, %c0_21] : memref<1x128xf32, #tpu.memory_space<vmem>>, vector<1x128xf32>
      %28 = vector.broadcast %27 : vector<1x128xf32> to vector<16x128xf32>
      %29 = arith.addf %26, %28 : vector<16x128xf32>
      %30 = tpu.iota {dimensions = array<i32: 1>} : vector<1x128xi32>
      %c32_i32 = arith.constant 32 : i32
      %31 = vector.broadcast %c32_i32 : i32 to vector<1x128xi32>
      %32 = arith.cmpi slt, %30, %31 : vector<1x128xi32>
      %33 = arith.extui %32 : vector<1x128xi1> to vector<1x128xi32>
      %34 = arith.sitofp %33 : vector<1x128xi32> to vector<1x128xf32>
      %35 = vector.broadcast %34 : vector<1x128xf32> to vector<16x128xf32>
      %36 = arith.mulf %29, %35 : vector<16x128xf32>
      %cst_22 = arith.constant dense<0.000000e+00> : vector<16xf32>
      %37 = vector.multi_reduction <add>, %36, %cst_22 [1] : vector<16x128xf32> to vector<16xf32>
      %38 = vector.shape_cast %37 : vector<16xf32> to vector<16x1xf32>
      %cst_23 = arith.constant 3.125000e-02 : f32
      %39 = vector.broadcast %cst_23 : f32 to vector<16x1xf32>
      %40 = arith.mulf %38, %39 : vector<16x1xf32>
      %41 = vector.broadcast %40 : vector<16x1xf32> to vector<16x128xf32>
      %42 = arith.subf %29, %41 : vector<16x128xf32>
      %43 = vector.broadcast %34 : vector<1x128xf32> to vector<16x128xf32>
      %44 = arith.mulf %42, %43 : vector<16x128xf32>
      %45 = arith.mulf %44, %44 : vector<16x128xf32>
      %cst_24 = arith.constant dense<0.000000e+00> : vector<16xf32>
      %46 = vector.multi_reduction <add>, %45, %cst_24 [1] : vector<16x128xf32> to vector<16xf32>
      %47 = vector.shape_cast %46 : vector<16xf32> to vector<16x1xf32>
      %cst_25 = arith.constant 3.125000e-02 : f32
      %48 = vector.broadcast %cst_25 : f32 to vector<16x1xf32>
      %49 = arith.mulf %47, %48 : vector<16x1xf32>
      %cst_26 = arith.constant 9.99999974E-6 : f32
      %50 = vector.broadcast %cst_26 : f32 to vector<16x1xf32>
      %51 = arith.addf %49, %50 : vector<16x1xf32>
      %52 = math.rsqrt %51 : vector<16x1xf32>
      %53 = vector.broadcast %52 : vector<16x1xf32> to vector<16x128xf32>
      %54 = arith.mulf %44, %53 : vector<16x128xf32>
      %c0_27 = arith.constant 0 : index
      %c0_28 = arith.constant 0 : index
      %55 = vector.load %arg7[%c0_27, %c0_28] : memref<1x128xf32, #tpu.memory_space<vmem>>, vector<1x128xf32>
      %56 = vector.broadcast %55 : vector<1x128xf32> to vector<16x128xf32>
      %57 = arith.mulf %54, %56 : vector<16x128xf32>
      %c0_29 = arith.constant 0 : index
      %c0_30 = arith.constant 0 : index
      %58 = vector.load %arg8[%c0_29, %c0_30] : memref<1x128xf32, #tpu.memory_space<vmem>>, vector<1x128xf32>
      %59 = vector.broadcast %58 : vector<1x128xf32> to vector<16x128xf32>
      %60 = arith.addf %57, %59 : vector<16x128xf32>
      %c0_31 = arith.constant 0 : index
      %c0_32 = arith.constant 0 : index
      %61 = vector.load %arg9[%c0_31, %c0_32] : memref<16x128xf32, #tpu.memory_space<vmem>>, vector<16x128xf32>
      tpu.vector_store %arg9[%c0_31, %c0_32], %60 {strides = array<i32>} : memref<16x128xf32, #tpu.memory_space<vmem>>, vector<16x128xf32>,
    } else {
    }
    return
  }
  func.func @transform_0(%arg0: i32, %arg1: i32) -> (i32, i32) {
    %c0_i32 = arith.constant 0 : i32
    %c0_i32_0 = arith.constant 0 : i32
    return %arg0, %c0_i32 : i32, i32
  }
  func.func @transform_1(%arg0: i32, %arg1: i32) -> (i32, i32) {
    %c0_i32 = arith.constant 0 : i32
    %c0_i32_0 = arith.constant 0 : i32
    return %c0_i32, %arg1 : i32, i32
  }
  func.func @transform_2(%arg0: i32, %arg1: i32) -> (i32, i32) {
    %c0_i32 = arith.constant 0 : i32
    %c0_i32_0 = arith.constant 0 : i32
    return %c0_i32, %arg1 : i32, i32
  }
  func.func @transform_3(%arg0: i32, %arg1: i32) -> (i32, i32) {
    %c0_i32 = arith.constant 0 : i32
    %c0_i32_0 = arith.constant 0 : i32
    return %arg1, %c0_i32 : i32, i32
  }
  func.func @transform_4(%arg0: i32, %arg1: i32) -> (i32, i32) {
    %c0_i32 = arith.constant 0 : i32
    %c0_i32_0 = arith.constant 0 : i32
    %c0_i32_1 = arith.constant 0 : i32
    return %c0_i32, %c0_i32_0 : i32, i32
  }
  func.func @transform_5(%arg0: i32, %arg1: i32) -> (i32, i32) {
    %c0_i32 = arith.constant 0 : i32
    %c0_i32_0 = arith.constant 0 : i32
    %c0_i32_1 = arith.constant 0 : i32
    return %c0_i32, %c0_i32_0 : i32, i32
  }
  func.func @transform_6(%arg0: i32, %arg1: i32) -> (i32, i32) {
    %c0_i32 = arith.constant 0 : i32
    %c0_i32_0 = arith.constant 0 : i32
    %c0_i32_1 = arith.constant 0 : i32
    return %c0_i32, %c0_i32_0 : i32, i32
  }
  func.func @transform_7(%arg0: i32, %arg1: i32) -> (i32, i32) {
    %c0_i32 = arith.constant 0 : i32
    %c0_i32_0 = arith.constant 0 : i32
    return %arg0, %c0_i32 : i32, i32
  }
}

</mosaic_0001>

<llo_original>
// kernel: tpu_custom_call.1
$region0: #{tpu_custom_call.1}
  #allocation0 [shape = 'u32[]', space=smem, size = 0x4, offset = 0x4, fixed_abs, tag = 'smem constant byte address 0x4 - core index']
  #allocation1 [shape = 'u32[144,128]{1,0:T(1,128)}', space=vmem, size = 0x12000, scoped, tag = 'internal scratch']
  #allocation2 [shape = 'f32[16,128]{1,0:T(8,128)}', space=vmem, size = 0x2000, scoped, tag = 'scratch operand']
  %s0 = inlined_call_operand.hbm [shape: bf16[16,128], index: 0, kind: input, shape index: {}]
  %s1 = inlined_call_operand.hbm [shape: bf16[128,128], index: 1, kind: input, shape index: {}]
  %s2 = inlined_call_operand.vmem [shape: f32[1,128], index: 2, kind: input, shape index: {}]
  %s3 = inlined_call_operand.hbm [shape: bf16[128,128], index: 3, kind: input, shape index: {}]
  %s4 = inlined_call_operand.vmem [shape: f32[1,128], index: 4, kind: input, shape index: {}]
  %s5 = inlined_call_operand.vmem [shape: f32[1,128], index: 5, kind: input, shape index: {}]
  %s6 = inlined_call_operand.vmem [shape: f32[1,128], index: 6, kind: input, shape index: {}]
  %s7 = inlined_call_operand.hbm [shape: f32[16,128], index: 7, kind: output, shape index: {}]
  %s8 = sld [smem:[#allocation0]]
  $region58: #{tpu_custom_call.1} parent=0
    _
  %s10 = ssub.s32 1, %s8
  %s11 = scalar_select 0, %s10, %s8
  $region1: #{tpu_custom_call.1} parent=0
    #allocation3 [shape = 'u8[4096]{0}', space=vmem, size = 0x1000, scoped, tag = 'input window, operand 0, single buffered']
    #allocation4 [shape = 's32[1]{0}', space=sflag, size = 0x4, scoped, tag = 'scoped memory for tpu_custom_call.1']
    #allocation5 [shape = 's32[1]{0}', space=sflag, size = 0x4, scoped, tag = 'scoped memory for tpu_custom_call.1']
    #allocation6 [shape = 'u8[32768]{0}', space=vmem, size = 0x8000, scoped, tag = 'input window, operand 1, single buffered']
    #allocation7 [shape = 's32[1]{0}', space=sflag, size = 0x4, scoped, tag = 'scoped memory for tpu_custom_call.1']
    #allocation8 [shape = 'u8[32768]{0}', space=vmem, size = 0x8000, scoped, tag = 'input window, operand 3, single buffered']
    #allocation9 [shape = 'u8[8192]{0}', space=vmem, size = 0x2000, scoped, tag = 'output window, operand 0, single buffered']
    %12 = vsyncpa [#allocation4], 0
    %13 = vsyncpa [#allocation7], 0
    %14 = vsyncpa [#allocation5], 0
    // Predicated region
    $region2: #{tpu_custom_call.1} parent=1 // pred_check
      _
    $region3: #{tpu_custom_call.1} parent=1 // pred_check_branch
      %16 = sbr.rel (0) target = $region5
    $region4: #{tpu_custom_call.1} parent=1 // pred_region
      %s18 = ssub.s32 128, 128
      %19 = vsyncadd [#allocation4], %s18
      %s20 = sshll.u32 [#allocation3], 4
      %s21 = int_to_ptr.vmem [resolvable:$true] %s20
      %26 = dma.hbm_to_vmem [thread:$0]  %s0, 128, %s21, [#allocation4], 64, 64, 4
    $region5: #{tpu_custom_call.1} parent=1 // pred_fallthru
      _
    // Predicated region
    $region6: #{tpu_custom_call.1} parent=1 // pred_check
      _
    $region7: #{tpu_custom_call.1} parent=1 // pred_check_branch
      %28 = sbr.rel (0) target = $region9
    $region8: #{tpu_custom_call.1} parent=1 // pred_region
      %s30 = ssub.s32 1024, 1024
      %31 = vsyncadd [#allocation7], %s30
      %s32 = sshll.u32 [#allocation6], 4
      %s33 = int_to_ptr.vmem [resolvable:$true] %s32
      %38 = dma.hbm_to_vmem [thread:$0]  %s1, 1024, %s33, [#allocation7], 64, 64, 4
    $region9: #{tpu_custom_call.1} parent=1 // pred_fallthru
      _
    // Predicated region
    $region10: #{tpu_custom_call.1} parent=1 // pred_check
      _
    $region11: #{tpu_custom_call.1} parent=1 // pred_check_branch
      %40 = sbr.rel (0) target = $region13
    $region12: #{tpu_custom_call.1} parent=1 // pred_region
      _
    $region13: #{tpu_custom_call.1} parent=1 // pred_fallthru
      _
    // Predicated region
    $region14: #{tpu_custom_call.1} parent=1 // pred_check
      _
    $region15: #{tpu_custom_call.1} parent=1 // pred_check_branch
      %42 = sbr.rel (0) target = $region17
    $region16: #{tpu_custom_call.1} parent=1 // pred_region
      %s44 = ssub.s32 1024, 1024
      %45 = vsyncadd [#allocation7], %s44
      %s46 = sshll.u32 [#allocation8], 4
      %s47 = int_to_ptr.vmem [resolvable:$true] %s46
      %52 = dma.hbm_to_vmem [thread:$0]  %s3, 1024, %s47, [#allocation7], 64, 64, 4
    $region17: #{tpu_custom_call.1} parent=1 // pred_fallthru
      _
    // Predicated region
    $region18: #{tpu_custom_call.1} parent=1 // pred_check
      _
    $region19: #{tpu_custom_call.1} parent=1 // pred_check_branch
      %54 = sbr.rel (0) target = $region21
    $region20: #{tpu_custom_call.1} parent=1 // pred_region
      _
    $region21: #{tpu_custom_call.1} parent=1 // pred_fallthru
      _
    // Predicated region
    $region22: #{tpu_custom_call.1} parent=1 // pred_check
      _
    $region23: #{tpu_custom_call.1} parent=1 // pred_check_branch
      %56 = sbr.rel (0) target = $region25
    $region24: #{tpu_custom_call.1} parent=1 // pred_region
      _
    $region25: #{tpu_custom_call.1} parent=1 // pred_fallthru
      _
    // Predicated region
    $region26: #{tpu_custom_call.1} parent=1 // pred_check
      _
    $region27: #{tpu_custom_call.1} parent=1 // pred_check_branch
      %58 = sbr.rel (0) target = $region29
    $region28: #{tpu_custom_call.1} parent=1 // pred_region
      _
    $region29: #{tpu_custom_call.1} parent=1 // pred_fallthru
      _
    // Predicated region
    $region30: #{tpu_custom_call.1} parent=1 // pred_check
      _
    $region31: #{tpu_custom_call.1} parent=1 // pred_check_branch
      %60 = sbr.rel (0) target = $region33
    $region32: #{tpu_custom_call.1} parent=1 // pred_region
      %61 = dma.done [#allocation4], 128
    $region33: #{tpu_custom_call.1} parent=1 // pred_fallthru
      _
    // Predicated region
    $region34: #{tpu_custom_call.1} parent=1 // pred_check
      _
    $region35: #{tpu_custom_call.1} parent=1 // pred_check_branch
      %63 = sbr.rel (0) target = $region37
    $region36: #{tpu_custom_call.1} parent=1 // pred_region
      %64 = dma.done [#allocation7], 1024
    $region37: #{tpu_custom_call.1} parent=1 // pred_fallthru
      _
    // Predicated region
    $region38: #{tpu_custom_call.1} parent=1 // pred_check
      _
    $region39: #{tpu_custom_call.1} parent=1 // pred_check_branch
      %66 = sbr.rel (0) target = $region41
    $region40: #{tpu_custom_call.1} parent=1 // pred_region
      %67 = dma.done [#allocation7], 1024
    $region41: #{tpu_custom_call.1} parent=1 // pred_fallthru
      _
    %p69 = scmp.eq.s32.totalorder 0, 0
    // Predicated region
    $region42: #{tpu_custom_call.1} parent=1 // pred_check
      %p70 = pneg %p69
    $region43: #{tpu_custom_call.1} parent=1 // pred_check_branch
      %72 = sbr.rel (%p70) target = $region45
    $region44: #{tpu_custom_call.1} parent=1 // pred_region
      %73 = vst [vmem:[#allocation2] sm:$0xff] 0.0
      %74 = vst [vmem:[#allocation2 + $0x8] sm:$0xff] 0.0
    $region45: #{tpu_custom_call.1} parent=1 // pred_fallthru
      _
    %v75 = vld [vmem:[#allocation3] sm:$0xf]
    %v76 = vld [vmem:[#allocation3 + $0x4] sm:$0xf]
    %v77 = vld [vmem:[#allocation6] sm:$0xf]
    %v78 = vld [vmem:[#allocation6 + $0x4] sm:$0xf]
    %v79 = vld [vmem:[#allocation6 + $0x8] sm:$0xf]
    %v80 = vld [vmem:[#allocation6 + $0xc] sm:$0xf]
    %v81 = vld [vmem:[#allocation6 + $0x10] sm:$0xf]
    %v82 = vld [vmem:[#allocation6 + $0x14] sm:$0xf]
    %v83 = vld [vmem:[#allocation6 + $0x18] sm:$0xf]
    %v84 = vld [vmem:[#allocation6 + $0x1c] sm:$0xf]
    %v85 = vld [vmem:[#allocation6 + $0x20] sm:$0xf]
    %v86 = vld [vmem:[#allocation6 + $0x24] sm:$0xf]
    %v87 = vld [vmem:[#allocation6 + $0x28] sm:$0xf]
    %v88 = vld [vmem:[#allocation6 + $0x2c] sm:$0xf]
    %v89 = vld [vmem:[#allocation6 + $0x30] sm:$0xf]
    %v90 = vld [vmem:[#allocation6 + $0x34] sm:$0xf]
    %v91 = vld [vmem:[#allocation6 + $0x38] sm:$0xf]
    %v92 = vld [vmem:[#allocation6 + $0x3c] sm:$0xf]
    %v93 = vld [vmem:[%s2] sm:$0x1]
    %v95 = vlaneseq
    %v96 = vshrl.u32 %v95, 7
    %v97 = vsub.s32 0, %v96
    %v98 = vrot.slane %v93, %v97
    %v102 = vunpack.c.l.b16 %v75
    %v103 = vunpack.c.l.b16 %v76
    %v104 = vpack.c.b16 %v103, %v102
    %v122 = vunpack.c.l.b16 %v77
    %v123 = vunpack.c.l.b16 %v78
    %v124 = vunpack.c.l.b16 %v79
    %v125 = vunpack.c.l.b16 %v80
    %v126 = vunpack.c.l.b16 %v81
    %v127 = vunpack.c.l.b16 %v82
    %v128 = vunpack.c.l.b16 %v83
    %v129 = vunpack.c.l.b16 %v84
    %v130 = vunpack.c.l.b16 %v85
    %v131 = vunpack.c.l.b16 %v86
    %v132 = vunpack.c.l.b16 %v87
    %v133 = vunpack.c.l.b16 %v88
    %v134 = vunpack.c.l.b16 %v89
    %v135 = vunpack.c.l.b16 %v90
    %v136 = vunpack.c.l.b16 %v91
    %v137 = vunpack.c.l.b16 %v92
    %v138 = vpack.c.b16 %v123, %v122
    %v139 = vpack.c.b16 %v125, %v124
    %v140 = vpack.c.b16 %v127, %v126
    %v141 = vpack.c.b16 %v129, %v128
    %v142 = vpack.c.b16 %v131, %v130
    %v143 = vpack.c.b16 %v133, %v132
    %v144 = vpack.c.b16 %v135, %v134
    %v145 = vpack.c.b16 %v137, %v136
    %154 = vmatprep.subr.bf16.mxu0 0
    %155 = vmatpush1.bf16.msra.mxu0 %v145
    %156 = vmatprep.subr.bf16.mxu0 0
    %157 = vmatpush1.bf16.msra.mxu0 %v144
    %158 = vmatprep.subr.bf16.mxu0 0
    %159 = vmatpush1.bf16.msra.mxu0 %v143
    %160 = vmatprep.subr.bf16.mxu0 0
    %161 = vmatpush1.bf16.msra.mxu0 %v142
    %162 = vmatprep.subr.bf16.mxu0 0
    %163 = vmatpush1.bf16.msra.mxu0 %v141
    %164 = vmatprep.subr.bf16.mxu0 0
    %165 = vmatpush1.bf16.msra.mxu0 %v140
    %166 = vmatprep.subr.bf16.mxu0 0
    %167 = vmatpush1.bf16.msra.mxu0 %v139
    %168 = vmatprep.subr.bf16.mxu0 0
    %169 = vmatpush1.bf16.msra.mxu0 %v138
    %170 = vmatprep.subr.bf16.mxu0 0
    %171 = vmatpush2.bf16.msra.mxu0 0
    %172 = vmatprep.subr.bf16.mxu0 0
    %173 = vmatpush2.bf16.msra.mxu0 0
    %174 = vmatprep.subr.bf16.mxu0 0
    %175 = vmatpush2.bf16.msra.mxu0 0
    %176 = vmatprep.subr.bf16.mxu0 0
    %177 = vmatpush2.bf16.msra.mxu0 0
    %178 = vmatprep.subr.bf16.mxu0 0
    %179 = vmatpush2.bf16.msra.mxu0 0
    %180 = vmatprep.subr.bf16.mxu0 0
    %181 = vmatpush2.bf16.msra.mxu0 0
    %182 = vmatprep.subr.bf16.mxu0 0
    %183 = vmatpush2.bf16.msra.mxu0 0
    %184 = vmatprep.subr.bf16.mxu0 0
    %185 = vmatpush2.bf16.msra.mxu0 0
    %186 = vmatprep.mubr.bf16.mxu0 0
    %187 = vmatmul.mubr.bf16.gmra.mxu0 %v104
    %v188 = vpop.f32.mrf.mxu0
    %v189 = vadd.f32 %v98, %v188
    %v190 = vpop.f32.mrf.mxu0
    %v191 = vpop.f32.mrf.mxu0
    %v192 = vadd.f32 %v98, %v191
    %v193 = vpop.f32.mrf.mxu0
    %194 = vdwg.mxu0
    %v195 = vmul.f32 %v189, 0.5
    %v196 = vmul.f32 %v192, 0.5
    %v197 = vmul.f32 %v189, 0.70710677
    %v198 = vmul.f32 %v192, 0.70710677
    %v199 = verf.f32.pop %v197
    %v200 = verf.f32.pop %v198
    %v201 = vadd.f32 %v199, 1.0
    %v202 = vadd.f32 %v200, 1.0
    %v203 = vmul.f32 %v195, %v201
    %v204 = vmul.f32 %v196, %v202
    %v205 = vld [vmem:[#allocation2] sm:$0xff]
    %v206 = vld [vmem:[#allocation2 + $0x8] sm:$0xff]
    %v207 = vpack.c.bf16 %v204, %v203
    %v208 = vld [vmem:[#allocation8] sm:$0xf]
    %v209 = vld [vmem:[#allocation8 + $0x4] sm:$0xf]
    %v210 = vld [vmem:[#allocation8 + $0x8] sm:$0xf]
    %v211 = vld [vmem:[#allocation8 + $0xc] sm:$0xf]
    %v212 = vld [vmem:[#allocation8 + $0x10] sm:$0xf]
    %v213 = vld [vmem:[#allocation8 + $0x14] sm:$0xf]
    %v214 = vld [vmem:[#allocation8 + $0x18] sm:$0xf]
    %v215 = vld [vmem:[#allocation8 + $0x1c] sm:$0xf]
    %v216 = vld [vmem:[#allocation8 + $0x20] sm:$0xf]
    %v217 = vld [vmem:[#allocation8 + $0x24] sm:$0xf]
    %v218 = vld [vmem:[#allocation8 + $0x28] sm:$0xf]
    %v219 = vld [vmem:[#allocation8 + $0x2c] sm:$0xf]
    %v220 = vld [vmem:[#allocation8 + $0x30] sm:$0xf]
    %v221 = vld [vmem:[#allocation8 + $0x34] sm:$0xf]
    %v222 = vld [vmem:[#allocation8 + $0x38] sm:$0xf]
    %v223 = vld [vmem:[#allocation8 + $0x3c] sm:$0xf]
    %v240 = vunpack.c.l.b16 %v208
    %v241 = vunpack.c.l.b16 %v209
    %v242 = vunpack.c.l.b16 %v210
    %v243 = vunpack.c.l.b16 %v211
    %v244 = vunpack.c.l.b16 %v212
    %v245 = vunpack.c.l.b16 %v213
    %v246 = vunpack.c.l.b16 %v214
    %v247 = vunpack.c.l.b16 %v215
    %v248 = vunpack.c.l.b16 %v216
    %v249 = vunpack.c.l.b16 %v217
    %v250 = vunpack.c.l.b16 %v218
    %v251 = vunpack.c.l.b16 %v219
    %v252 = vunpack.c.l.b16 %v220
    %v253 = vunpack.c.l.b16 %v221
    %v254 = vunpack.c.l.b16 %v222
    %v255 = vunpack.c.l.b16 %v223
    %v256 = vpack.c.b16 %v241, %v240
    %v257 = vpack.c.b16 %v243, %v242
    %v258 = vpack.c.b16 %v245, %v244
    %v259 = vpack.c.b16 %v247, %v246
    %v260 = vpack.c.b16 %v249, %v248
    %v261 = vpack.c.b16 %v251, %v250
    %v262 = vpack.c.b16 %v253, %v252
    %v263 = vpack.c.b16 %v255, %v254
    %272 = vmatprep.subr.bf16.mxu0 0
    %273 = vmatpush1.bf16.msra.mxu0 %v263
    %274 = vmatprep.subr.bf16.mxu0 0
    %275 = vmatpush1.bf16.msra.mxu0 %v262
    %276 = vmatprep.subr.bf16.mxu0 0
    %277 = vmatpush1.bf16.msra.mxu0 %v261
    %278 = vmatprep.subr.bf16.mxu0 0
    %279 = vmatpush1.bf16.msra.mxu0 %v260
    %280 = vmatprep.subr.bf16.mxu0 0
    %281 = vmatpush1.bf16.msra.mxu0 %v259
    %282 = vmatprep.subr.bf16.mxu0 0
    %283 = vmatpush1.bf16.msra.mxu0 %v258
    %284 = vmatprep.subr.bf16.mxu0 0
    %285 = vmatpush1.bf16.msra.mxu0 %v257
    %286 = vmatprep.subr.bf16.mxu0 0
    %287 = vmatpush1.bf16.msra.mxu0 %v256
    %288 = vmatprep.subr.bf16.mxu0 0
    %289 = vmatpush2.bf16.msra.mxu0 0
    %290 = vmatprep.subr.bf16.mxu0 0
    %291 = vmatpush2.bf16.msra.mxu0 0
    %292 = vmatprep.subr.bf16.mxu0 0
    %293 = vmatpush2.bf16.msra.mxu0 0
    %294 = vmatprep.subr.bf16.mxu0 0
    %295 = vmatpush2.bf16.msra.mxu0 0
    %296 = vmatprep.subr.bf16.mxu0 0
    %297 = vmatpush2.bf16.msra.mxu0 0
    %298 = vmatprep.subr.bf16.mxu0 0
    %299 = vmatpush2.bf16.msra.mxu0 0
    %300 = vmatprep.subr.bf16.mxu0 0
    %301 = vmatpush2.bf16.msra.mxu0 0
    %302 = vmatprep.subr.bf16.mxu0 0
    %303 = vmatpush2.bf16.msra.mxu0 0
    %304 = vmatprep.mubr.bf16.mxu0 0
    %305 = vmatmul.mubr.bf16.gmra.mxu0 %v207
    %v306 = vpop.f32.mrf.mxu0
    %v307 = vadd.f32 0.0, %v306
    %v308 = vpop.f32.mrf.mxu0
    %v309 = vpop.f32.mrf.mxu0
    %v310 = vadd.f32 0.0, %v309
    %v311 = vpop.f32.mrf.mxu0
    %312 = vdwg.mxu0
    %v313 = vadd.f32 %v205, %v307
    %v314 = vadd.f32 %v206, %v310
    %315 = vst [vmem:[#allocation2] sm:$0xff] %v313
    %316 = vst [vmem:[#allocation2 + $0x8] sm:$0xff] %v314
    // Predicated region
    $region46: #{tpu_custom_call.1} parent=1 // pred_check
      %p317 = pneg %p69
    $region47: #{tpu_custom_call.1} parent=1 // pred_check_branch
      %319 = sbr.rel (%p317) target = $region49
    $region48: #{tpu_custom_call.1} parent=1 // pred_region
      %v320 = vld [vmem:[#allocation2] sm:$0xff]
      %v321 = vld [vmem:[#allocation2 + $0x8] sm:$0xff]
      %v322 = vld [vmem:[%s4] sm:$0x1]
      %v324 = vlaneseq
      %v325 = vshrl.u32 %v324, 7
      %v326 = vsub.s32 0, %v325
      %v327 = vrot.slane %v322, %v326
      %v329 = vadd.f32 %v320, %v327
      %v330 = vadd.f32 %v321, %v327
      %v331 = vlaneseq
      %v332 = vand.u32 %v331, 127
      %vm333 = vcmp.lt.s32.totalorder %v332, 32
      %v334 = vsel %vm333, 1, 0
      %v335 = vcvt.s32.f32 %v334
      %v336 = vmul.f32 %v329, %v335
      %v337 = vmul.f32 %v330, %v335
      %338 = vadd.xlane.f32.xlu0 %v336
      %v339 = vpop.xlane.xlu0 %338
      %340 = vadd.xlane.f32.xlu0 %v337
      %v341 = vpop.xlane.xlu0 %340
      %v342 = vmul.f32 %v339, 0.03125
      %v343 = vmul.f32 %v341, 0.03125
      %v344 = vsub.f32 %v329, %v342
      %v345 = vsub.f32 %v330, %v343
      %v346 = vmul.f32 %v344, %v335
      %v347 = vmul.f32 %v345, %v335
      %v348 = vmul.f32 %v346, %v346
      %v349 = vmul.f32 %v347, %v347
      %350 = vadd.xlane.f32.xlu0 %v348
      %v351 = vpop.xlane.xlu0 %350
      %352 = vadd.xlane.f32.xlu0 %v349
      %v353 = vpop.xlane.xlu0 %352
      %v354 = vmul.f32 %v351, 0.03125
      %v355 = vmul.f32 %v353, 0.03125
      %v356 = vadd.f32 %v354, 1e-05
      %v357 = vadd.f32 %v355, 1e-05
      %v358 = vrsqrt.pop %v356
      %v359 = vrsqrt.pop %v357
      %v360 = vmul.f32 %v346, %v358
      %v361 = vmul.f32 %v347, %v359
      %v362 = vld [vmem:[%s5] sm:$0x1]
      %v364 = vlaneseq
      %v365 = vshrl.u32 %v364, 7
      %v366 = vsub.s32 0, %v365
      %v367 = vrot.slane %v362, %v366
      %v369 = vmul.f32 %v360, %v367
      %v370 = vmul.f32 %v361, %v367
      %v371 = vld [vmem:[%s6] sm:$0x1]
      %v373 = vlaneseq
      %v374 = vshrl.u32 %v373, 7
      %v375 = vsub.s32 0, %v374
      %v376 = vrot.slane %v371, %v375
      %v378 = vadd.f32 %v369, %v376
      %v379 = vadd.f32 %v370, %v376
      %380 = vst [vmem:[#allocation9] sm:$0xff] %v378
      %381 = vst [vmem:[#allocation9 + $0x8] sm:$0xff] %v379
    $region49: #{tpu_custom_call.1} parent=1 // pred_fallthru
      _
    // Predicated region
    $region50: #{tpu_custom_call.1} parent=1 // pred_check
      _
    $region51: #{tpu_custom_call.1} parent=1 // pred_check_branch
      %383 = sbr.rel (0) target = $region53
    $region52: #{tpu_custom_call.1} parent=1 // pred_region
      %s385 = ssub.s32 256, 256
      %386 = vsyncadd [#allocation5], %s385
      %s387 = sshll.u32 [#allocation9], 4
      %s388 = int_to_ptr.vmem [resolvable:$true] %s387
      %393 = dma.vmem_to_hbm [thread:$0]  %s388, 256, %s7, [#allocation5], 128, 128, 8
    $region53: #{tpu_custom_call.1} parent=1 // pred_fallthru
      _
    // Predicated region
    $region54: #{tpu_custom_call.1} parent=1 // pred_check
      _
    $region55: #{tpu_custom_call.1} parent=1 // pred_check_branch
      %395 = sbr.rel (0) target = $region57
    $region56: #{tpu_custom_call.1} parent=1 // pred_region
      %396 = dma.done [#allocation5], 256
    $region57: #{tpu_custom_call.1} parent=1 // pred_fallthru
      _
    %397 = vsyncpa [#allocation4], 1
    %398 = vsyncpa [#allocation7], 1
    %399 = vsyncpa [#allocation5], 1

</llo_original>
